<compile_context>
chip_gen: v6e
topology: v6e:2x2x1
jax: 0.10.0
libtpu: 0.0.40
codegen_flags: <defaults>
</compile_context>

<pallas_src>
import functools

import jax
import jax.numpy as jnp
from jax.experimental import pallas as pl
from jax.experimental.pallas import tpu as pltpu


# ----------------------------------------------------------------------------
# Pallas kernel: fused embedding stub + 3-layer classifier MLP, transposed
#   emb^T = tanh(WembAug^T @ [pos;1]^T)            (pos_dim+1 -> proj), bf16 MXU
#   h1^T  = relu(W1^T @ emb^T + b1^T)              (proj -> hidden),    bf16 MXU
#   h2^T  = relu(W2^T @ h1^T  + b2^T)              (hidden -> hidden/2),bf16 MXU
#   o     = sum_k w3[k] * h2^T[k, :] + b3          (hidden/2 -> 1, VPU+XLU)
# ----------------------------------------------------------------------------
def classifier_kernel(posT_ref, wembT_ref, w1T_ref, b1T_ref,
                      w2T_ref, b2T_ref, w3c_ref, b3_ref, o_ref,
                      *, tanh_in_bf16):
    # Layer 0: bf16 x bf16 on the MXU, f32 accumulation; bias already folded
    # into wembT via the constant 1.0 row of posT.
    pre = jnp.dot(wembT_ref[...], posT_ref[...],
                  preferred_element_type=jnp.float32)     # (proj, tile_n) f32

    if tanh_in_bf16:
        # v6e / v7x: bf16 EUP path; output is already bf16 for layer 1.
        embT = jnp.tanh(pre.astype(jnp.bfloat16))
    else:
        # v5e: no bf16 EUP/VPU path -> f32 tanh, then pack to bf16.
        embT = jnp.tanh(pre).astype(jnp.bfloat16)

    # Layer 1: bf16 MXU inputs, f32 accumulation, bias + ReLU in f32.
    h1T = jnp.dot(w1T_ref[...], embT,
                  preferred_element_type=jnp.float32) + b1T_ref[...]
    h1T = jnp.maximum(h1T, 0.0)

    # Layer 2: bf16 MXU inputs, f32 accumulation.
    h2T = jnp.dot(w2T_ref[...], h1T.astype(jnp.bfloat16),
                  preferred_element_type=jnp.float32) + b2T_ref[...]
    h2T = jnp.maximum(h2T, 0.0)                            # (H2, tile_n)

    # Layer 3: (H2 -> 1) as VPU multiply + cross-sublane reduction; result is
    # lane-dense (1, tile_n) and stored with full-width vector stores.
    o_ref[...] = jnp.sum(h2T * w3c_ref[...], axis=0, keepdims=True) + b3_ref[...]


def _use_bf16_tanh():
    """bf16 EUP path exists on v6e / v7x only; keep f32 tanh elsewhere."""
    try:
        kind = jax.devices()[0].device_kind.lower()
    except Exception:
        return False
    return ("v6" in kind) or ("v7" in kind)


def _choose_tile_n(n, desired):
    """Large tile to amortize per-step overhead, but keep >= 2 tiles when N
    allows so both v7x TensorCores get work (v5e/v6e are single-TC and just
    want the biggest tile that fits, which this also gives)."""
    desired = max(512, (desired // 512) * 512)
    half_rounded = ((pl.cdiv(n, 2) + 511) // 512) * 512
    return min(desired, max(512, half_rounded))


def classifier_forward(pos, params, *, tile_n=4096):
    """pos: (N, pos_dim) f32 -> logits (N,) f32 (fused embedding + head)."""
    N, pos_dim = pos.shape
    pos_pad = pos_dim + 1                       # [x, y, z, 1] -> bias fold
    proj = params["w_emb"].shape[1]
    H = params["w1"].shape[1]
    H2 = params["w2"].shape[1]

    tile_n = _choose_tile_n(N, tile_n)
    num_tiles = pl.cdiv(N, tile_n)
    n_pad = num_tiles * tile_n

    tanh_in_bf16 = _use_bf16_tanh()

    # Positions: built directly in bf16 at (pos_dim+1, n_pad) -> 8 B/particle
    # (was a 32 B/particle f32 (8, n_pad) slab).  Last row is the constant 1.0
    # used to fold b_emb into the layer-0 matmul.
    posT = jnp.zeros((pos_pad, n_pad), jnp.bfloat16)
    posT = posT.at[pos_dim, :].set(1.0)
    posT = posT.at[:pos_dim, :N].set(pos.T.astype(jnp.bfloat16))

    # Transposed weights / biases (features on sublanes).  b_emb is appended
    # as the last column of wembT (matches the 1.0 row of posT).
    w_aug = jnp.concatenate([params["w_emb"], params["b_emb"]], axis=0)
    wembT = w_aug.T.astype(jnp.bfloat16)            # (proj, pos_pad) bf16
    w1T = params["w1"].T.astype(jnp.bfloat16)       # (H, proj)  bf16 MXU input
    b1T = params["b1"].T                            # (H, 1)     f32
    w2T = params["w2"].T.astype(jnp.bfloat16)       # (H2, H)    bf16 MXU input
    b2T = params["b2"].T                            # (H2, 1)    f32
    w3c = params["w3"]                              # (H2, 1)    f32 (VPU path)
    b3 = params["b3"]                               # (1, 1)     f32

    flops = 2 * n_pad * (pos_pad * proj + proj * H + H * H2 + H2)
    bytes_accessed = (
        n_pad * pos_pad * 2 + n_pad * 4             # bf16 pos in, f32 logits out
        + (proj * pos_pad + H * proj + H2 * H) * 2  # bf16 weights
        + (H + H2 + H2 + 1) * 4)                    # f32 biases / w3

    const = lambda i: (0, 0)
    kernel = functools.partial(classifier_kernel, tanh_in_bf16=tanh_in_bf16)
    out = pl.pallas_call(
        kernel,
        out_shape=jax.ShapeDtypeStruct((1, n_pad), jnp.float32),
        grid_spec=pltpu.PrefetchScalarGridSpec(
            num_scalar_prefetch=0,
            grid=(num_tiles,),
            in_specs=[
                pl.BlockSpec((pos_pad, tile_n), lambda i: (0, i)),  # [pos;1]^T
                pl.BlockSpec((proj, pos_pad), const),               # [Wemb;b]^T
                pl.BlockSpec((H, proj), const),                     # W1^T
                pl.BlockSpec((H, 1), const),                        # b1^T
                pl.BlockSpec((H2, H), const),                       # W2^T
                pl.BlockSpec((H2, 1), const),                       # b2^T
                pl.BlockSpec((H2, 1), const),                       # w3 column
                pl.BlockSpec((1, 1), const),                        # b3
            ],
            out_specs=pl.BlockSpec((1, tile_n), lambda i: (0, i)),  # lane-dense
        ),
        compiler_params=pltpu.CompilerParams(
            dimension_semantics=("parallel",)),
        cost_estimate=pl.CostEstimate(
            flops=flops,
            transcendentals=n_pad * proj,
            bytes_accessed=bytes_accessed),
    )(posT, wembT, w1T, b1T, w2T, b2T, w3c, b3)

    return out[0, :N]  # drop padding; equivalent of .squeeze(-1)


# ----------------------------------------------------------------------------
# Parameter construction (deterministic, PyTorch-Linear-style uniform init)
# ----------------------------------------------------------------------------
def _linear_params(key, fan_in, fan_out):
    kw, kb = jax.random.split(key)
    bound = 1.0 / jnp.sqrt(float(fan_in))
    w = jax.random.uniform(kw, (fan_in, fan_out), jnp.float32, -bound, bound)
    b = jax.random.uniform(kb, (1, fan_out), jnp.float32, -bound, bound)
    return w, b


def make_params(key, pos_dim=3, proj_dim=32, hidden_dim=32):
    k0, k1, k2, k3 = jax.random.split(key, 4)
    # GNN stub embedding params (placeholder for AmorphousParticleGNN).
    w_emb, b_emb = _linear_params(k0, pos_dim, proj_dim)
    # Head: Linear(proj, H) -> ReLU -> Linear(H, H//2) -> ReLU -> Linear(H//2, 1)
    w1, b1 = _linear_params(k1, proj_dim, hidden_dim)
    w2, b2 = _linear_params(k2, hidden_dim, hidden_dim // 2)
    w3, b3 = _linear_params(k3, hidden_dim // 2, 1)
    return dict(w_emb=w_emb, b_emb=b_emb,
                w1=w1, b1=b1, w2=w2, b2=b2, w3=w3, b3=b3)


# ----------------------------------------------------------------------------
# Forward pass mirroring ParticleClassifier.forward
# ----------------------------------------------------------------------------
def particle_classifier_forward(pos, params, batch=None, k=None, *, tile_n=4096):
    if batch is None:
        batch = jnp.zeros(pos.shape[0], dtype=jnp.int32)  # single graph
    # TODO(synk): AmorphousParticleGNN source (kNN graph + message passing +
    # projection head) was not provided; stubbed with a deterministic
    # per-particle linear+tanh embedding, fused into the Pallas kernel above
    # (batch / k are therefore unused by the stub).
    return classifier_forward(pos, params, tile_n=tile_n)


# ----------------------------------------------------------------------------
# Pure-JAX reference mirroring the kernel math (bf16 MXU inputs, f32 accum)
# ----------------------------------------------------------------------------
def _reference_forward(pos, params, *, tanh_in_bf16):
    ones = jnp.ones((pos.shape[0], 1), pos.dtype)
    pos_aug = jnp.concatenate([pos, ones], axis=1).astype(jnp.bfloat16)
    w_aug = jnp.concatenate([params["w_emb"], params["b_emb"]],
                            axis=0).astype(jnp.bfloat16)
    pre = jnp.dot(pos_aug, w_aug, preferred_element_type=jnp.float32)
    if tanh_in_bf16:
        emb = jnp.tanh(pre.astype(jnp.bfloat16))
    else:
        emb = jnp.tanh(pre).astype(jnp.bfloat16)
    h1 = jnp.maximum(
        jnp.dot(emb, params["w1"].astype(jnp.bfloat16),
                preferred_element_type=jnp.float32) + params["b1"], 0.0)
    h2 = jnp.maximum(
        jnp.dot(h1.astype(jnp.bfloat16), params["w2"].astype(jnp.bfloat16),
                preferred_element_type=jnp.float32) + params["b2"], 0.0)
    return (h2 @ params["w3"] + params["b3"])[:, 0]


if __name__ == "__main__":
    key = jax.random.PRNGKey(0)
    k_pos, k_par = jax.random.split(key)

    N, POS_DIM = 1000, 3            # N particles (not a multiple of tile_n)
    PROJ_DIM, HIDDEN = 32, 32       # small shapes consistent with the module

    pos = jax.random.normal(k_pos, (N, POS_DIM), jnp.float32)
    params = make_params(k_par, pos_dim=POS_DIM, proj_dim=PROJ_DIM,
                         hidden_dim=HIDDEN)

    logits = particle_classifier_forward(pos, params)
    logits = jax.block_until_ready(logits)

    ref = _reference_forward(pos, params, tanh_in_bf16=_use_bf16_tanh())
    assert logits.shape == (N,)
    assert jnp.allclose(logits, ref, atol=2e-2, rtol=2e-2), float(
        jnp.max(jnp.abs(logits - ref)))

    print("KERNEL_OK")
</pallas_src>

<mosaic_0001>
module attributes {stable_mosaic.version = 11 : i64} {
  func.func @classifier_kernel(%arg0: i32, %arg1: memref<4x512xbf16, #tpu.memory_space<vmem>>, %arg2: memref<32x4xbf16, #tpu.memory_space<vmem>>, %arg3: memref<32x32xbf16, #tpu.memory_space<vmem>>, %arg4: memref<32x1xf32, #tpu.memory_space<vmem>>, %arg5: memref<16x32xbf16, #tpu.memory_space<vmem>>, %arg6: memref<16x1xf32, #tpu.memory_space<vmem>>, %arg7: memref<16x1xf32, #tpu.memory_space<vmem>>, %arg8: memref<1x1xf32, #tpu.memory_space<vmem>>, %arg9: memref<1x512xf32, #tpu.memory_space<vmem>>) attributes {dimension_semantics = [#tpu.dimension_semantics<parallel>], iteration_bounds = array<i64: 2>, scalar_prefetch = 0 : i64, scratch_operands = 0 : i64, tpu.core_type = #tpu.core_type<tc>, window_params = [{transform_indices = @transform_0, window_bounds = array<i64: 4, 512>}, {pipeline_mode = #tpu.pipeline_mode<synchronous>, transform_indices = @transform_1, window_bounds = array<i64: 32, 4>}, {pipeline_mode = #tpu.pipeline_mode<synchronous>, transform_indices = @transform_2, window_bounds = array<i64: 32, 32>}, {pipeline_mode = #tpu.pipeline_mode<synchronous>, transform_indices = @transform_3, window_bounds = array<i64: 32, 1>}, {pipeline_mode = #tpu.pipeline_mode<synchronous>, transform_indices = @transform_4, window_bounds = array<i64: 16, 32>}, {pipeline_mode = #tpu.pipeline_mode<synchronous>, transform_indices = @transform_5, window_bounds = array<i64: 16, 1>}, {pipeline_mode = #tpu.pipeline_mode<synchronous>, transform_indices = @transform_6, window_bounds = array<i64: 16, 1>}, {pipeline_mode = #tpu.pipeline_mode<synchronous>, transform_indices = @transform_7, window_bounds = array<i64: 1, 1>}, {transform_indices = @transform_8, window_bounds = array<i64: 1, 512>}]} {
    %c0 = arith.constant 0 : index
    %c0_0 = arith.constant 0 : index
    %0 = vector.load %arg2[%c0, %c0_0] : memref<32x4xbf16, #tpu.memory_space<vmem>>, vector<32x4xbf16>
    %c0_1 = arith.constant 0 : index
    %c0_2 = arith.constant 0 : index
    %1 = vector.load %arg1[%c0_1, %c0_2] : memref<4x512xbf16, #tpu.memory_space<vmem>>, vector<4x512xbf16>
    %cst = arith.constant dense<0.000000e+00> : vector<32x512xf32>
    %2 = tpu.matmul %0, %1, %cst {dimension_numbers = #tpu.dot_dimension_numbers<[1], [0], [0], [1], [0, 0, 1, 1], [], []>} : vector<32x4xbf16>, vector<4x512xbf16>, vector<32x512xf32> -> vector<32x512xf32>
    %3 = math.tanh %2 : vector<32x512xf32>
    %4 = arith.truncf %3 : vector<32x512xf32> to vector<32x512xbf16>
    %c0_3 = arith.constant 0 : index
    %c0_4 = arith.constant 0 : index
    %5 = vector.load %arg3[%c0_3, %c0_4] : memref<32x32xbf16, #tpu.memory_space<vmem>>, vector<32x32xbf16>
    %cst_5 = arith.constant dense<0.000000e+00> : vector<32x512xf32>
    %6 = tpu.matmul %5, %4, %cst_5 {dimension_numbers = #tpu.dot_dimension_numbers<[1], [0], [0], [1], [0, 0, 1, 1], [], []>} : vector<32x32xbf16>, vector<32x512xbf16>, vector<32x512xf32> -> vector<32x512xf32>
    %c0_6 = arith.constant 0 : index
    %c0_7 = arith.constant 0 : index
    %7 = vector.load %arg4[%c0_6, %c0_7] : memref<32x1xf32, #tpu.memory_space<vmem>>, vector<32x1xf32>
    %8 = vector.broadcast %7 : vector<32x1xf32> to vector<32x512xf32>
    %9 = arith.addf %6, %8 : vector<32x512xf32>
    %cst_8 = arith.constant 0.000000e+00 : f32
    %10 = vector.broadcast %cst_8 : f32 to vector<32x512xf32>
    %11 = arith.maximumf %9, %10 : vector<32x512xf32>
    %c0_9 = arith.constant 0 : index
    %c0_10 = arith.constant 0 : index
    %12 = vector.load %arg5[%c0_9, %c0_10] : memref<16x32xbf16, #tpu.memory_space<vmem>>, vector<16x32xbf16>
    %13 = arith.truncf %11 : vector<32x512xf32> to vector<32x512xbf16>
    %cst_11 = arith.constant dense<0.000000e+00> : vector<16x512xf32>
    %14 = tpu.matmul %12, %13, %cst_11 {dimension_numbers = #tpu.dot_dimension_numbers<[1], [0], [0], [1], [0, 0, 1, 1], [], []>} : vector<16x32xbf16>, vector<32x512xbf16>, vector<16x512xf32> -> vector<16x512xf32>
    %c0_12 = arith.constant 0 : index
    %c0_13 = arith.constant 0 : index
    %15 = vector.load %arg6[%c0_12, %c0_13] : memref<16x1xf32, #tpu.memory_space<vmem>>, vector<16x1xf32>
    %16 = vector.broadcast %15 : vector<16x1xf32> to vector<16x512xf32>
    %17 = arith.addf %14, %16 : vector<16x512xf32>
    %cst_14 = arith.constant 0.000000e+00 : f32
    %18 = vector.broadcast %cst_14 : f32 to vector<16x512xf32>
    %19 = arith.maximumf %17, %18 : vector<16x512xf32>
    %c0_15 = arith.constant 0 : index
    %c0_16 = arith.constant 0 : index
    %20 = vector.load %arg7[%c0_15, %c0_16] : memref<16x1xf32, #tpu.memory_space<vmem>>, vector<16x1xf32>
    %21 = vector.broadcast %20 : vector<16x1xf32> to vector<16x512xf32>
    %22 = arith.mulf %19, %21 : vector<16x512xf32>
    %cst_17 = arith.constant dense<0.000000e+00> : vector<512xf32>
    %23 = vector.multi_reduction <add>, %22, %cst_17 [0] : vector<16x512xf32> to vector<512xf32>
    %24 = vector.shape_cast %23 : vector<512xf32> to vector<1x512xf32>
    %c0_18 = arith.constant 0 : index
    %c0_19 = arith.constant 0 : index
    %25 = vector.load %arg8[%c0_18, %c0_19] : memref<1x1xf32, #tpu.memory_space<vmem>>, vector<1x1xf32>
    %26 = vector.broadcast %25 : vector<1x1xf32> to vector<1x512xf32>
    %27 = arith.addf %24, %26 : vector<1x512xf32>
    %c0_20 = arith.constant 0 : index
    %c0_21 = arith.constant 0 : index
    %28 = vector.load %arg9[%c0_20, %c0_21] : memref<1x512xf32, #tpu.memory_space<vmem>>, vector<1x512xf32>
    tpu.vector_store %arg9[%c0_20, %c0_21], %27 {strides = array<i32>} : memref<1x512xf32, #tpu.memory_space<vmem>>, vector<1x512xf32>,
    return
  }
  func.func @transform_0(%arg0: i32) -> (i32, i32) {
    %c0_i32 = arith.constant 0 : i32
    %c0_i32_0 = arith.constant 0 : i32
    return %c0_i32, %arg0 : i32, i32
  }
  func.func @transform_1(%arg0: i32) -> (i32, i32) {
    %c0_i32 = arith.constant 0 : i32
    %c0_i32_0 = arith.constant 0 : i32
    %c0_i32_1 = arith.constant 0 : i32
    return %c0_i32, %c0_i32_0 : i32, i32
  }
  func.func @transform_2(%arg0: i32) -> (i32, i32) {
    %c0_i32 = arith.constant 0 : i32
    %c0_i32_0 = arith.constant 0 : i32
    %c0_i32_1 = arith.constant 0 : i32
    return %c0_i32, %c0_i32_0 : i32, i32
  }
  func.func @transform_3(%arg0: i32) -> (i32, i32) {
    %c0_i32 = arith.constant 0 : i32
    %c0_i32_0 = arith.constant 0 : i32
    %c0_i32_1 = arith.constant 0 : i32
    return %c0_i32, %c0_i32_0 : i32, i32
  }
  func.func @transform_4(%arg0: i32) -> (i32, i32) {
    %c0_i32 = arith.constant 0 : i32
    %c0_i32_0 = arith.constant 0 : i32
    %c0_i32_1 = arith.constant 0 : i32
    return %c0_i32, %c0_i32_0 : i32, i32
  }
  func.func @transform_5(%arg0: i32) -> (i32, i32) {
    %c0_i32 = arith.constant 0 : i32
    %c0_i32_0 = arith.constant 0 : i32
    %c0_i32_1 = arith.constant 0 : i32
    return %c0_i32, %c0_i32_0 : i32, i32
  }
  func.func @transform_6(%arg0: i32) -> (i32, i32) {
    %c0_i32 = arith.constant 0 : i32
    %c0_i32_0 = arith.constant 0 : i32
    %c0_i32_1 = arith.constant 0 : i32
    return %c0_i32, %c0_i32_0 : i32, i32
  }
  func.func @transform_7(%arg0: i32) -> (i32, i32) {
    %c0_i32 = arith.constant 0 : i32
    %c0_i32_0 = arith.constant 0 : i32
    %c0_i32_1 = arith.constant 0 : i32
    return %c0_i32, %c0_i32_0 : i32, i32
  }
  func.func @transform_8(%arg0: i32) -> (i32, i32) {
    %c0_i32 = arith.constant 0 : i32
    %c0_i32_0 = arith.constant 0 : i32
    return %c0_i32, %arg0 : i32, i32
  }
}

</mosaic_0001>

<llo_original>
// kernel: tpu_custom_call.1
$region0: #{tpu_custom_call.1}
  #allocation0 [shape = 'u32[]', space=smem, size = 0x4, offset = 0x4, fixed_abs, tag = 'smem constant byte address 0x4 - core index']
  #allocation1 [shape = 'u32[144,128]{1,0:T(1,128)}', space=vmem, size = 0x12000, scoped, tag = 'internal scratch']
  #allocation2 [shape = 'f32[1,1]{1,0:T(1,128)S(1)}', space=vmem, size = 0x200, scoped, tag = 'scoped memory for tpu_custom_call.1']
  %s0 = inlined_call_operand.vmem [shape: bf16[4,1024], index: 0, kind: input, shape index: {}]
  %s1 = inlined_call_operand.vmem [shape: bf16[32,4], index: 1, kind: input, shape index: {}]
  %s2 = inlined_call_operand.vmem [shape: bf16[32,32], index: 2, kind: input, shape index: {}]
  %s3 = inlined_call_operand.vmem [shape: f32[32,1], index: 3, kind: input, shape index: {}]
  %s4 = inlined_call_operand.vmem [shape: bf16[16,32], index: 4, kind: input, shape index: {}]
  %s5 = inlined_call_operand.vmem [shape: f32[16,1], index: 5, kind: input, shape index: {}]
  %s6 = inlined_call_operand.vmem [shape: f32[16,1], index: 6, kind: input, shape index: {}]
  %s7 = inlined_call_operand.<no memory space> [shape: f32[1,1], index: 7, kind: input, shape index: {}]
  %s8 = inlined_call_operand.hbm [shape: f32[1,1024], index: 8, kind: output, shape index: {}]
  %s9 = sld [smem:[#allocation0]]
  $region65: #{tpu_custom_call.1} parent=0
    _
  %s11 = ssub.s32 1, %s9
  %s12 = scalar_select 0, %s11, %s9
  %v13 = vstv %s7
  %14 = vst [vmem:[#allocation2] sm:$0x1] %v13
  $region1: #{tpu_custom_call.1} parent=0
    #allocation3 [shape = 'u8[4096]{0}', space=vmem, size = 0x1000, scoped, tag = 'output window, operand 0']
    #allocation4 [shape = 's32[2]{0}', space=sflag, size = 0x8, scoped, tag = 'scoped memory for tpu_custom_call.1']
    %15 = vsyncpa [#allocation4], 0
    %s16 = scalar_lea.sflag [#allocation4], 1
    %17 = vsyncpa %s16, 0
    loop: start=0, step=1, limit=4
    $region2: #{tpu_custom_call.1} parent=1 // loop_pre_header
      _
    $region3: #{tpu_custom_call.1} parent=1 // loop_header
      %s19 = sphi 0, %s23
      %p20 = scmp.ge.s32.totalorder %s19, 4
      %s29 = sphi 0, %s31
      %s32 = sphi 0, %s29
      %s33 = sphi 0, %s32
      %s49 = sphi 0, %s33
      %s53 = sphi 0, %s53
      %s55 = sphi 0, %s53
      %s56 = sphi 0, %s55
      %s70 = sphi 0, %s56
      %s74 = sphi 0, %s74
      %s76 = sphi 0, %s74
      %s77 = sphi 0, %s76
      %s91 = sphi 0, %s77
      %s95 = sphi 0, %s95
      %s97 = sphi 0, %s95
      %s98 = sphi 0, %s97
      %s112 = sphi 0, %s98
      %s116 = sphi 0, %s116
      %s118 = sphi 0, %s116
      %s119 = sphi 0, %s118
      %s133 = sphi 0, %s119
      %s137 = sphi 0, %s137
      %s139 = sphi 0, %s137
      %s140 = sphi 0, %s139
      %s154 = sphi 0, %s140
      %s158 = sphi 0, %s158
      %s160 = sphi 0, %s158
      %s161 = sphi 0, %s160
      %s175 = sphi 0, %s161
      %s179 = sphi 0, %s179
      %s181 = sphi 0, %s179
      %s182 = sphi 0, %s181
      %s196 = sphi 0, %s182
      %s202 = sphi 0, %s204
      %s205 = sphi 0, %s202
      %s206 = sphi 0, %s205
      %s222 = sphi 0, %s206
    $region4: #{tpu_custom_call.1} parent=1 // loop_header_branch
      %22 = sbr.rel (%p20) target = $region8
    $region5: #{tpu_custom_call.1} parent=1 // loop_body
      %s24 = ssub.s32 %s19, 1
      %s25 = ssub.s32 %s19, 2
      %s26 = sadd.s32 %s19, 1
      %s27 = ssub.s32 %s19, %s26
      %p28 = scmp.eq.s32.totalorder %s27, 0
      %s30 = sadd.s32 %s29, 1
      %s31 = scalar_select %p28, %s29, %s30
      %p34 = pneg %p28
      %p35 = scmp.eq.s32.totalorder %s19, 1
      %p36 = por %p34, %p35
      %p37 = scmp.ne.s32.totalorder %s29, %s32
      %p38 = scmp.eq.s32.totalorder %s19, 0
      %p39 = por %p37, %p38
      %p40 = scmp.ne.s32.totalorder %s29, %s32
      %p41 = scmp.eq.s32.totalorder %s24, 1
      %p42 = por %p40, %p41
      %p43 = scmp.ne.s32.totalorder %s32, %s33
      %p44 = scmp.eq.s32.totalorder %s24, 0
      %p45 = por %p43, %p44
      %p46 = scmp.ne.s32.totalorder %s32, %s33
      %p47 = scmp.eq.s32.totalorder %s25, 1
      %p48 = por %p46, %p47
      %p50 = scmp.ne.s32.totalorder %s33, %s49
      %p51 = scmp.eq.s32.totalorder %s25, 0
      %p52 = por %p50, %p51
      %s54 = sadd.s32 %s53, 1
      %p57 = scmp.eq.s32.totalorder %s19, 1
      %p58 = scmp.ne.s32.totalorder %s53, %s55
      %p59 = scmp.eq.s32.totalorder %s19, 0
      %p60 = por %p58, %p59
      %p61 = scmp.ne.s32.totalorder %s53, %s55
      %p62 = scmp.eq.s32.totalorder %s24, 1
      %p63 = por %p61, %p62
      %p64 = scmp.ne.s32.totalorder %s55, %s56
      %p65 = scmp.eq.s32.totalorder %s24, 0
      %p66 = por %p64, %p65
      %p67 = scmp.ne.s32.totalorder %s55, %s56
      %p68 = scmp.eq.s32.totalorder %s25, 1
      %p69 = por %p67, %p68
      %p71 = scmp.ne.s32.totalorder %s56, %s70
      %p72 = scmp.eq.s32.totalorder %s25, 0
      %p73 = por %p71, %p72
      %s75 = sadd.s32 %s74, 1
      %p78 = scmp.eq.s32.totalorder %s19, 1
      %p79 = scmp.ne.s32.totalorder %s74, %s76
      %p80 = scmp.eq.s32.totalorder %s19, 0
      %p81 = por %p79, %p80
      %p82 = scmp.ne.s32.totalorder %s74, %s76
      %p83 = scmp.eq.s32.totalorder %s24, 1
      %p84 = por %p82, %p83
      %p85 = scmp.ne.s32.totalorder %s76, %s77
      %p86 = scmp.eq.s32.totalorder %s24, 0
      %p87 = por %p85, %p86
      %p88 = scmp.ne.s32.totalorder %s76, %s77
      %p89 = scmp.eq.s32.totalorder %s25, 1
      %p90 = por %p88, %p89
      %p92 = scmp.ne.s32.totalorder %s77, %s91
      %p93 = scmp.eq.s32.totalorder %s25, 0
      %p94 = por %p92, %p93
      %s96 = sadd.s32 %s95, 1
      %p99 = scmp.eq.s32.totalorder %s19, 1
      %p100 = scmp.ne.s32.totalorder %s95, %s97
      %p101 = scmp.eq.s32.totalorder %s19, 0
      %p102 = por %p100, %p101
      %p103 = scmp.ne.s32.totalorder %s95, %s97
      %p104 = scmp.eq.s32.totalorder %s24, 1
      %p105 = por %p103, %p104
      %p106 = scmp.ne.s32.totalorder %s97, %s98
      %p107 = scmp.eq.s32.totalorder %s24, 0
      %p108 = por %p106, %p107
      %p109 = scmp.ne.s32.totalorder %s97, %s98
      %p110 = scmp.eq.s32.totalorder %s25, 1
      %p111 = por %p109, %p110
      %p113 = scmp.ne.s32.totalorder %s98, %s112
      %p114 = scmp.eq.s32.totalorder %s25, 0
      %p115 = por %p113, %p114
      %s117 = sadd.s32 %s116, 1
      %p120 = scmp.eq.s32.totalorder %s19, 1
      %p121 = scmp.ne.s32.totalorder %s116, %s118
      %p122 = scmp.eq.s32.totalorder %s19, 0
      %p123 = por %p121, %p122
      %p124 = scmp.ne.s32.totalorder %s116, %s118
      %p125 = scmp.eq.s32.totalorder %s24, 1
      %p126 = por %p124, %p125
      %p127 = scmp.ne.s32.totalorder %s118, %s119
      %p128 = scmp.eq.s32.totalorder %s24, 0
      %p129 = por %p127, %p128
      %p130 = scmp.ne.s32.totalorder %s118, %s119
      %p131 = scmp.eq.s32.totalorder %s25, 1
      %p132 = por %p130, %p131
      %p134 = scmp.ne.s32.totalorder %s119, %s133
      %p135 = scmp.eq.s32.totalorder %s25, 0
      %p136 = por %p134, %p135
      %s138 = sadd.s32 %s137, 1
      %p141 = scmp.eq.s32.totalorder %s19, 1
      %p142 = scmp.ne.s32.totalorder %s137, %s139
      %p143 = scmp.eq.s32.totalorder %s19, 0
      %p144 = por %p142, %p143
      %p145 = scmp.ne.s32.totalorder %s137, %s139
      %p146 = scmp.eq.s32.totalorder %s24, 1
      %p147 = por %p145, %p146
      %p148 = scmp.ne.s32.totalorder %s139, %s140
      %p149 = scmp.eq.s32.totalorder %s24, 0
      %p150 = por %p148, %p149
      %p151 = scmp.ne.s32.totalorder %s139, %s140
      %p152 = scmp.eq.s32.totalorder %s25, 1
      %p153 = por %p151, %p152
      %p155 = scmp.ne.s32.totalorder %s140, %s154
      %p156 = scmp.eq.s32.totalorder %s25, 0
      %p157 = por %p155, %p156
      %s159 = sadd.s32 %s158, 1
      %p162 = scmp.eq.s32.totalorder %s19, 1
      %p163 = scmp.ne.s32.totalorder %s158, %s160
      %p164 = scmp.eq.s32.totalorder %s19, 0
      %p165 = por %p163, %p164
      %p166 = scmp.ne.s32.totalorder %s158, %s160
      %p167 = scmp.eq.s32.totalorder %s24, 1
      %p168 = por %p166, %p167
      %p169 = scmp.ne.s32.totalorder %s160, %s161
      %p170 = scmp.eq.s32.totalorder %s24, 0
      %p171 = por %p169, %p170
      %p172 = scmp.ne.s32.totalorder %s160, %s161
      %p173 = scmp.eq.s32.totalorder %s25, 1
      %p174 = por %p172, %p173
      %p176 = scmp.ne.s32.totalorder %s161, %s175
      %p177 = scmp.eq.s32.totalorder %s25, 0
      %p178 = por %p176, %p177
      %s180 = sadd.s32 %s179, 1
      %p183 = scmp.eq.s32.totalorder %s19, 1
      %p184 = scmp.ne.s32.totalorder %s179, %s181
      %p185 = scmp.eq.s32.totalorder %s19, 0
      %p186 = por %p184, %p185
      %p187 = scmp.ne.s32.totalorder %s179, %s181
      %p188 = scmp.eq.s32.totalorder %s24, 1
      %p189 = por %p187, %p188
      %p190 = scmp.ne.s32.totalorder %s181, %s182
      %p191 = scmp.eq.s32.totalorder %s24, 0
      %p192 = por %p190, %p191
      %p193 = scmp.ne.s32.totalorder %s181, %s182
      %p194 = scmp.eq.s32.totalorder %s25, 1
      %p195 = por %p193, %p194
      %p197 = scmp.ne.s32.totalorder %s182, %s196
      %p198 = scmp.eq.s32.totalorder %s25, 0
      %p199 = por %p197, %p198
      %s200 = ssub.s32 %s19, %s26
      %p201 = scmp.eq.s32.totalorder %s200, 0
      %s203 = sadd.s32 %s202, 1
      %s204 = scalar_select %p201, %s202, %s203
      %p207 = pneg %p201
      %p208 = scmp.eq.s32.totalorder %s19, 1
      %p209 = por %p207, %p208
      %p210 = scmp.ne.s32.totalorder %s202, %s205
      %p211 = scmp.eq.s32.totalorder %s19, 0
      %p212 = por %p210, %p211
      %p213 = scmp.ne.s32.totalorder %s202, %s205
      %p214 = scmp.eq.s32.totalorder %s24, 1
      %p215 = por %p213, %p214
      %p216 = scmp.ne.s32.totalorder %s205, %s206
      %p217 = scmp.eq.s32.totalorder %s24, 0
      %p218 = por %p216, %p217
      %p219 = scmp.ne.s32.totalorder %s205, %s206
      %p220 = scmp.eq.s32.totalorder %s25, 1
      %p221 = por %p219, %p220
      %p223 = scmp.ne.s32.totalorder %s206, %s222
      %p224 = scmp.eq.s32.totalorder %s25, 0
      %p225 = por %p223, %p224
      %p226 = scmp.le.s32.totalorder 1, %s19
      %p227 = scmp.lt.s32.totalorder %s19, 3
      %p228 = pnand %p226, %p227
      %p229 = pneg %p228
      // Predicated region
      $region9: #{tpu_custom_call.1} parent=5 // pred_check
        _
      $region10: #{tpu_custom_call.1} parent=5 // pred_check_branch
        %231 = sbr.rel (%p228) target = $region12
      $region11: #{tpu_custom_call.1} parent=5 // pred_region
        %s232 = ssub.s32 %s19, 1
        // Predicated region
        $region13: #{tpu_custom_call.1} parent=11 // pred_check
          %p233 = pneg %p66
        $region14: #{tpu_custom_call.1} parent=11 // pred_check_branch
          %235 = sbr.rel (%p233) target = $region16
        $region15: #{tpu_custom_call.1} parent=11 // pred_region
          _
        $region16: #{tpu_custom_call.1} parent=11 // pred_fallthru
          _
        // Predicated region
        $region17: #{tpu_custom_call.1} parent=11 // pred_check
          %p236 = pneg %p87
        $region18: #{tpu_custom_call.1} parent=11 // pred_check_branch
          %238 = sbr.rel (%p236) target = $region20
        $region19: #{tpu_custom_call.1} parent=11 // pred_region
          _
        $region20: #{tpu_custom_call.1} parent=11 // pred_fallthru
          _
        // Predicated region
        $region21: #{tpu_custom_call.1} parent=11 // pred_check
          %p239 = pneg %p108
        $region22: #{tpu_custom_call.1} parent=11 // pred_check_branch
          %241 = sbr.rel (%p239) target = $region24
        $region23: #{tpu_custom_call.1} parent=11 // pred_region
          _
        $region24: #{tpu_custom_call.1} parent=11 // pred_fallthru
          _
        // Predicated region
        $region25: #{tpu_custom_call.1} parent=11 // pred_check
          %p242 = pneg %p129
        $region26: #{tpu_custom_call.1} parent=11 // pred_check_branch
          %244 = sbr.rel (%p242) target = $region28
        $region27: #{tpu_custom_call.1} parent=11 // pred_region
          _
        $region28: #{tpu_custom_call.1} parent=11 // pred_fallthru
          _
        // Predicated region
        $region29: #{tpu_custom_call.1} parent=11 // pred_check
          %p245 = pneg %p150
        $region30: #{tpu_custom_call.1} parent=11 // pred_check_branch
          %247 = sbr.rel (%p245) target = $region32
        $region31: #{tpu_custom_call.1} parent=11 // pred_region
          _
        $region32: #{tpu_custom_call.1} parent=11 // pred_fallthru
          _
        // Predicated region
        $region33: #{tpu_custom_call.1} parent=11 // pred_check
          %p248 = pneg %p171
        $region34: #{tpu_custom_call.1} parent=11 // pred_check_branch
          %250 = sbr.rel (%p248) target = $region36
        $region35: #{tpu_custom_call.1} parent=11 // pred_region
          _
        $region36: #{tpu_custom_call.1} parent=11 // pred_fallthru
          _
        // Predicated region
        $region37: #{tpu_custom_call.1} parent=11 // pred_check
          %p251 = pneg %p192
        $region38: #{tpu_custom_call.1} parent=11 // pred_check_branch
          %253 = sbr.rel (%p251) target = $region40
        $region39: #{tpu_custom_call.1} parent=11 // pred_region
          _
        $region40: #{tpu_custom_call.1} parent=11 // pred_fallthru
          _
      $region12: #{tpu_custom_call.1} parent=5 // pred_fallthru
        _
      %p254 = scmp.lt.s32.totalorder %s19, 2
      // Predicated region
      $region41: #{tpu_custom_call.1} parent=5 // pred_check
        %p255 = pneg %p254
      $region42: #{tpu_custom_call.1} parent=5 // pred_check_branch
        %257 = sbr.rel (%p255) target = $region44
      $region43: #{tpu_custom_call.1} parent=5 // pred_region
        // Predicated region
        $region45: #{tpu_custom_call.1} parent=43 // pred_check
          %p258 = pneg %p39
        $region46: #{tpu_custom_call.1} parent=43 // pred_check_branch
          %260 = sbr.rel (%p258) target = $region48
        $region47: #{tpu_custom_call.1} parent=43 // pred_region
          %s261 = smul.u32 4, %s19
          %p262 = scmp.lt.s32.totalorder %s261, 7
          %s263 = scalar_select %p262, %s261, 7
          %s264 = smul.addr %s263, 2
          %s265 = scalar_lea.vmem %s0, %s264
          %s266 = smul.u32 4, %s19
        $region48: #{tpu_custom_call.1} parent=43 // pred_fallthru
          _
      $region44: #{tpu_custom_call.1} parent=5 // pred_fallthru
        _
      %p267 = scmp.le.s32.totalorder 1, %s19
      %p268 = scmp.lt.s32.totalorder %s19, 3
      %p269 = pnand %p267, %p268
      %p270 = pneg %p269
      // Predicated region
      $region49: #{tpu_custom_call.1} parent=5 // pred_check
        _
      $region50: #{tpu_custom_call.1} parent=5 // pred_check_branch
        %272 = sbr.rel (%p269) target = $region52
      $region51: #{tpu_custom_call.1} parent=5 // pred_region
        %s273 = ssub.s32 %s19, 1
        %s274 = smul.u32 4, %s24
        %p275 = scmp.lt.s32.totalorder %s274, 7
        %s276 = scalar_select %p275, %s274, 7
        %s277 = smul.addr %s276, 2
        %s278 = scalar_lea.vmem %s0, %s277
        %p279 = pneg %p45
        %p280 = pneg %p42
        %p281 = pneg %p66
        %p282 = pneg %p63
        %p283 = pneg %p87
        %p284 = pneg %p84
        %p285 = pneg %p108
        %p286 = pneg %p105
        %p287 = pneg %p129
        %p288 = pneg %p126
        %p289 = pneg %p150
        %p290 = pneg %p147
        %p291 = pneg %p171
        %p292 = pneg %p168
        %p293 = pneg %p192
        %p294 = pneg %p189
        %p295 = pneg %p218
        %p296 = pneg %p215
        %s297 = sand.u32 %s205, 1
        %s298 = scalar_lea.sflag [#allocation4], %s297
        %s299 = sand.u32 %s205, 1
        %s300 = smul.addr %s299, 4
        %s301 = scalar_lea.vmem [#allocation3], %s300
        %s302 = smul.u32 4, %s24
        %p303 = scmp.lt.s32.totalorder %s302, 7
        %s304 = scalar_select %p303, %s302, 7
        %s305 = smul.addr %s304, 2
        %s306 = scalar_lea.vmem %s0, %s305
        %s307 = smul.u32 4, %s24
        %s308 = smul.u32 4, %s24
        %v310 = vld [vmem:[%s1] sm:$0xf]
        %v311 = vld [vmem:[%s1 + $0x4] sm:$0xf]
        %v312 = vld [vmem:[%s1 + $0x8] sm:$0xf]
        %v313 = vld [vmem:[%s1 + $0xc] sm:$0xf]
        %v314 = vld [vmem:[%s306] sm:$0xff]
        %v319 = vunpack.c.l.b16 %v310
        %v320 = vunpack.c.l.b16 %v311
        %v321 = vunpack.c.l.b16 %v312
        %v322 = vunpack.c.l.b16 %v313
        %v323 = vpack.c.b16 %v320, %v319
        %v324 = vpack.c.b16 %v322, %v321
        %v326 = vcombine.high %v314, %v314
        %v328 = vunpack.c.l.s4 1983009808
        %v329 = vunpack.c.0.s8 %v328
        %v330 = vlaneseq
        %v331 = vshrl.u32 %v330, 7
        %v332 = vsub.s32 %v329, %v331
        %v333 = vrot.slane %v314, %v332
        %v335 = vunpack.c.l.s4 1983009808
        %v336 = vunpack.c.0.s8 %v335
        %v337 = vlaneseq
        %v338 = vshrl.u32 %v337, 7
        %v339 = vsub.s32 %v336, %v338
        %v340 = vrot.slane %v326, %v339
        %v341 = vcombine.high %v333, %v333
        %v342 = vcombine.high %v340, %v340
        %vm343 = vcmask 31744
        %v345 = vsel %vm343, %v323, 0
        %v348 = vsel %vm343, %v324, 0
        %vm350 = vcmask 1041408
        %v352 = vsel %vm350, %v333, 0
        %v355 = vsel %vm350, %v341, 0
        %v358 = vsel %vm350, %v340, 0
        %v361 = vsel %vm350, %v342, 0
        %363 = vmatprep.subr.bf16.mxu0 0
        %364 = vmatpush1.bf16.msra.mxu0 0
        %365 = vmatprep.subr.bf16.mxu0 0
        %366 = vmatpush1.bf16.msra.mxu0 0
        %367 = vmatprep.subr.bf16.mxu0 0
        %368 = vmatpush1.bf16.msra.mxu0 0
        %369 = vmatprep.subr.bf16.mxu0 0
        %370 = vmatpush1.bf16.msra.mxu0 0
        %371 = vmatprep.subr.bf16.mxu0 0
        %372 = vmatpush1.bf16.msra.mxu0 0
        %373 = vmatprep.subr.bf16.mxu0 0
        %374 = vmatpush1.bf16.msra.mxu0 0
        %375 = vmatprep.subr.bf16.mxu0 0
        %376 = vmatpush1.bf16.msra.mxu0 0
        %377 = vmatprep.subr.bf16.mxu0 %v355
        %378 = vmatpush1.bf16.msra.mxu0 %v352
        %379 = vmatprep.subr.bf16.mxu0 0
        %380 = vmatpush2.bf16.msra.mxu0 0
        %381 = vmatprep.subr.bf16.mxu0 0
        %382 = vmatpush2.bf16.msra.mxu0 0
        %383 = vmatprep.subr.bf16.mxu0 0
        %384 = vmatpush2.bf16.msra.mxu0 0
        %385 = vmatprep.subr.bf16.mxu0 0
        %386 = vmatpush2.bf16.msra.mxu0 0
        %387 = vmatprep.subr.bf16.mxu0 0
        %388 = vmatpush2.bf16.msra.mxu0 0
        %389 = vmatprep.subr.bf16.mxu0 0
        %390 = vmatpush2.bf16.msra.mxu0 0
        %391 = vmatprep.subr.bf16.mxu0 0
        %392 = vmatpush2.bf16.msra.mxu0 0
        %393 = vmatprep.subr.bf16.mxu0 0
        %394 = vmatpush2.bf16.msra.mxu0 0
        %395 = vmatprep.mubr.bf16.mxu0 0
        %396 = vmatmul.mubr.bf16.gmra.mxu0 %v345
        %v397 = vpop.f32.mrf.mxu0
        %v398 = vadd.f32 0.0, %v397
        %v399 = vpop.f32.mrf.mxu0
        %v400 = vadd.f32 0.0, %v399
        %v401 = vpop.f32.mrf.mxu0
        %v402 = vadd.f32 0.0, %v401
        %v403 = vpop.f32.mrf.mxu0
        %v404 = vadd.f32 0.0, %v403
        %405 = vmatprep.mubr.bf16.mxu0 0
        %406 = vmatmul.mubr.bf16.gmra.mxu0 %v348
        %v407 = vpop.f32.mrf.mxu0
        %v408 = vadd.f32 0.0, %v407
        %v409 = vpop.f32.mrf.mxu0
        %v410 = vadd.f32 0.0, %v409
        %v411 = vpop.f32.mrf.mxu0
        %v412 = vadd.f32 0.0, %v411
        %v413 = vpop.f32.mrf.mxu0
        %v414 = vadd.f32 0.0, %v413
        %415 = vdwg.mxu0
        %416 = vmatprep.subr.bf16.mxu0 0
        %417 = vmatpush1.bf16.msra.mxu0 0
        %418 = vmatprep.subr.bf16.mxu0 0
        %419 = vmatpush1.bf16.msra.mxu0 0
        %420 = vmatprep.subr.bf16.mxu0 0
        %421 = vmatpush1.bf16.msra.mxu0 0
        %422 = vmatprep.subr.bf16.mxu0 0
        %423 = vmatpush1.bf16.msra.mxu0 0
        %424 = vmatprep.subr.bf16.mxu0 0
        %425 = vmatpush1.bf16.msra.mxu0 0
        %426 = vmatprep.subr.bf16.mxu0 0
        %427 = vmatpush1.bf16.msra.mxu0 0
        %428 = vmatprep.subr.bf16.mxu0 0
        %429 = vmatpush1.bf16.msra.mxu0 0
        %430 = vmatprep.subr.bf16.mxu0 %v361
        %431 = vmatpush1.bf16.msra.mxu0 %v358
        %432 = vmatprep.subr.bf16.mxu0 0
        %433 = vmatpush2.bf16.msra.mxu0 0
        %434 = vmatprep.subr.bf16.mxu0 0
        %435 = vmatpush2.bf16.msra.mxu0 0
        %436 = vmatprep.subr.bf16.mxu0 0
        %437 = vmatpush2.bf16.msra.mxu0 0
        %438 = vmatprep.subr.bf16.mxu0 0
        %439 = vmatpush2.bf16.msra.mxu0 0
        %440 = vmatprep.subr.bf16.mxu0 0
        %441 = vmatpush2.bf16.msra.mxu0 0
        %442 = vmatprep.subr.bf16.mxu0 0
        %443 = vmatpush2.bf16.msra.mxu0 0
        %444 = vmatprep.subr.bf16.mxu0 0
        %445 = vmatpush2.bf16.msra.mxu0 0
        %446 = vmatprep.subr.bf16.mxu0 0
        %447 = vmatpush2.bf16.msra.mxu0 0
        %448 = vmatprep.mubr.bf16.mxu0 0
        %449 = vmatmul.mubr.bf16.gmra.mxu0 %v345
        %v450 = vpop.f32.mrf.mxu0
        %v451 = vadd.f32 0.0, %v450
        %v452 = vpop.f32.mrf.mxu0
        %v453 = vadd.f32 0.0, %v452
        %v454 = vpop.f32.mrf.mxu0
        %v455 = vadd.f32 0.0, %v454
        %v456 = vpop.f32.mrf.mxu0
        %v457 = vadd.f32 0.0, %v456
        %458 = vmatprep.mubr.bf16.mxu0 0
        %459 = vmatmul.mubr.bf16.gmra.mxu0 %v348
        %v460 = vpop.f32.mrf.mxu0
        %v461 = vadd.f32 0.0, %v460
        %v462 = vpop.f32.mrf.mxu0
        %v463 = vadd.f32 0.0, %v462
        %v464 = vpop.f32.mrf.mxu0
        %v465 = vadd.f32 0.0, %v464
        %v466 = vpop.f32.mrf.mxu0
        %v467 = vadd.f32 0.0, %v466
        %468 = vdwg.mxu0
        %v469 = vtanh.pop %v398
        %v470 = vtanh.pop %v400
        %v471 = vtanh.pop %v451
        %v472 = vtanh.pop %v453
        %v473 = vtanh.pop %v402
        %v474 = vtanh.pop %v404
        %v475 = vtanh.pop %v455
        %v476 = vtanh.pop %v457
        %v477 = vtanh.pop %v408
        %v478 = vtanh.pop %v410
        %v479 = vtanh.pop %v461
        %v480 = vtanh.pop %v463
        %v481 = vtanh.pop %v412
        %v482 = vtanh.pop %v414
        %v483 = vtanh.pop %v465
        %v484 = vtanh.pop %v467
        %v485 = vpack.c.bf16 %v473, %v469
        %v486 = vpack.c.bf16 %v474, %v470
        %v487 = vpack.c.bf16 %v475, %v471
        %v488 = vpack.c.bf16 %v476, %v472
        %v489 = vpack.c.bf16 %v481, %v477
        %v490 = vpack.c.bf16 %v482, %v478
        %v491 = vpack.c.bf16 %v483, %v479
        %v492 = vpack.c.bf16 %v484, %v480
        %v493 = vld [vmem:[%s2] sm:$0xf]
        %v494 = vld [vmem:[%s2 + $0x4] sm:$0xf]
        %v495 = vld [vmem:[%s2 + $0x8] sm:$0xf]
        %v496 = vld [vmem:[%s2 + $0xc] sm:$0xf]
        %v497 = vld [vmem:[%s3] sm:$0xff]
        %v498 = vld [vmem:[%s3 + $0x8] sm:$0xff]
        %v499 = vld [vmem:[%s3 + $0x10] sm:$0xff]
        %v500 = vld [vmem:[%s3 + $0x18] sm:$0xff]
        %502 = vset.pattern.permute.xlu0 0
        %503 = vperm.xlu0 %502, %v497
        %v504 = vpop.permute.xlu0 %503
        %507 = vset.pattern.permute.xlu0 0
        %508 = vperm.xlu0 %507, %v498
        %v509 = vpop.permute.xlu0 %508
        %512 = vset.pattern.permute.xlu0 0
        %513 = vperm.xlu0 %512, %v499
        %v514 = vpop.permute.xlu0 %513
        %517 = vset.pattern.permute.xlu0 0
        %518 = vperm.xlu0 %517, %v500
        %v519 = vpop.permute.xlu0 %518
        %v525 = vunpack.c.l.b16 %v493
        %v526 = vunpack.c.l.b16 %v494
        %v527 = vunpack.c.l.b16 %v495
        %v528 = vunpack.c.l.b16 %v496
        %v529 = vpack.c.b16 %v526, %v525
        %v530 = vpack.c.b16 %v528, %v527
        %vm531 = vcmask 261120
        %v533 = vsel %vm531, %v529, 0
        %v536 = vsel %vm531, %v530, 0
        %538 = vmatprep.subr.bf16.mxu0 0
        %539 = vmatpush1.bf16.msra.mxu0 0
        %540 = vmatprep.subr.bf16.mxu0 0
        %541 = vmatpush1.bf16.msra.mxu0 0
        %542 = vmatprep.subr.bf16.mxu0 0
        %543 = vmatpush1.bf16.msra.mxu0 0
        %544 = vmatprep.subr.bf16.mxu0 0
        %545 = vmatpush1.bf16.msra.mxu0 0
        %546 = vmatprep.subr.bf16.mxu0 0
        %547 = vmatpush1.bf16.msra.mxu0 0
        %548 = vmatprep.subr.bf16.mxu0 0
        %549 = vmatpush1.bf16.msra.mxu0 0
        %550 = vmatprep.subr.bf16.mxu0 %v490
        %551 = vmatpush1.bf16.msra.mxu0 %v489
        %552 = vmatprep.subr.bf16.mxu0 %v486
        %553 = vmatpush1.bf16.msra.mxu0 %v485
        %554 = vmatprep.subr.bf16.mxu0 0
        %555 = vmatpush2.bf16.msra.mxu0 0
        %556 = vmatprep.subr.bf16.mxu0 0
        %557 = vmatpush2.bf16.msra.mxu0 0
        %558 = vmatprep.subr.bf16.mxu0 0
        %559 = vmatpush2.bf16.msra.mxu0 0
        %560 = vmatprep.subr.bf16.mxu0 0
        %561 = vmatpush2.bf16.msra.mxu0 0
        %562 = vmatprep.subr.bf16.mxu0 0
        %563 = vmatpush2.bf16.msra.mxu0 0
        %564 = vmatprep.subr.bf16.mxu0 0
        %565 = vmatpush2.bf16.msra.mxu0 0
        %566 = vmatprep.subr.bf16.mxu0 0
        %567 = vmatpush2.bf16.msra.mxu0 0
        %568 = vmatprep.subr.bf16.mxu0 0
        %569 = vmatpush2.bf16.msra.mxu0 0
        %570 = vmatprep.mubr.bf16.mxu0 0
        %571 = vmatmul.mubr.bf16.gmra.mxu0 %v533
        %v572 = vpop.f32.mrf.mxu0
        %v573 = vadd.f32 %v504, %v572
        %v574 = vpop.f32.mrf.mxu0
        %v575 = vadd.f32 %v504, %v574
        %v576 = vpop.f32.mrf.mxu0
        %v577 = vadd.f32 %v509, %v576
        %v578 = vpop.f32.mrf.mxu0
        %v579 = vadd.f32 %v509, %v578
        %580 = vmatprep.mubr.bf16.mxu0 0
        %581 = vmatmul.mubr.bf16.gmra.mxu0 %v536
        %v582 = vpop.f32.mrf.mxu0
        %v583 = vadd.f32 %v514, %v582
        %v584 = vpop.f32.mrf.mxu0
        %v585 = vadd.f32 %v514, %v584
        %v586 = vpop.f32.mrf.mxu0
        %v587 = vadd.f32 %v519, %v586
        %v588 = vpop.f32.mrf.mxu0
        %v589 = vadd.f32 %v519, %v588
        %590 = vdwg.mxu0
        %591 = vmatprep.subr.bf16.mxu0 0
        %592 = vmatpush1.bf16.msra.mxu0 0
        %593 = vmatprep.subr.bf16.mxu0 0
        %594 = vmatpush1.bf16.msra.mxu0 0
        %595 = vmatprep.subr.bf16.mxu0 0
        %596 = vmatpush1.bf16.msra.mxu0 0
        %597 = vmatprep.subr.bf16.mxu0 0
        %598 = vmatpush1.bf16.msra.mxu0 0
        %599 = vmatprep.subr.bf16.mxu0 0
        %600 = vmatpush1.bf16.msra.mxu0 0
        %601 = vmatprep.subr.bf16.mxu0 0
        %602 = vmatpush1.bf16.msra.mxu0 0
        %603 = vmatprep.subr.bf16.mxu0 %v492
        %604 = vmatpush1.bf16.msra.mxu0 %v491
        %605 = vmatprep.subr.bf16.mxu0 %v488
        %606 = vmatpush1.bf16.msra.mxu0 %v487
        %607 = vmatprep.subr.bf16.mxu0 0
        %608 = vmatpush2.bf16.msra.mxu0 0
        %609 = vmatprep.subr.bf16.mxu0 0
        %610 = vmatpush2.bf16.msra.mxu0 0
        %611 = vmatprep.subr.bf16.mxu0 0
        %612 = vmatpush2.bf16.msra.mxu0 0
        %613 = vmatprep.subr.bf16.mxu0 0
        %614 = vmatpush2.bf16.msra.mxu0 0
        %615 = vmatprep.subr.bf16.mxu0 0
        %616 = vmatpush2.bf16.msra.mxu0 0
        %617 = vmatprep.subr.bf16.mxu0 0
        %618 = vmatpush2.bf16.msra.mxu0 0
        %619 = vmatprep.subr.bf16.mxu0 0
        %620 = vmatpush2.bf16.msra.mxu0 0
        %621 = vmatprep.subr.bf16.mxu0 0
        %622 = vmatpush2.bf16.msra.mxu0 0
        %623 = vmatprep.mubr.bf16.mxu0 0
        %624 = vmatmul.mubr.bf16.gmra.mxu0 %v533
        %v625 = vpop.f32.mrf.mxu0
        %v626 = vadd.f32 %v504, %v625
        %v627 = vpop.f32.mrf.mxu0
        %v628 = vadd.f32 %v504, %v627
        %v629 = vpop.f32.mrf.mxu0
        %v630 = vadd.f32 %v509, %v629
        %v631 = vpop.f32.mrf.mxu0
        %v632 = vadd.f32 %v509, %v631
        %633 = vmatprep.mubr.bf16.mxu0 0
        %634 = vmatmul.mubr.bf16.gmra.mxu0 %v536
        %v635 = vpop.f32.mrf.mxu0
        %v636 = vadd.f32 %v514, %v635
        %v637 = vpop.f32.mrf.mxu0
        %v638 = vadd.f32 %v514, %v637
        %v639 = vpop.f32.mrf.mxu0
        %v640 = vadd.f32 %v519, %v639
        %v641 = vpop.f32.mrf.mxu0
        %v642 = vadd.f32 %v519, %v641
        %643 = vdwg.mxu0
        %v644 = vmax.f32 %v573, 0.0
        %v645 = vmax.f32 %v575, 0.0
        %v646 = vmax.f32 %v626, 0.0
        %v647 = vmax.f32 %v628, 0.0
        %v648 = vmax.f32 %v577, 0.0
        %v649 = vmax.f32 %v579, 0.0
        %v650 = vmax.f32 %v630, 0.0
        %v651 = vmax.f32 %v632, 0.0
        %v652 = vmax.f32 %v583, 0.0
        %v653 = vmax.f32 %v585, 0.0
        %v654 = vmax.f32 %v636, 0.0
        %v655 = vmax.f32 %v638, 0.0
        %v656 = vmax.f32 %v587, 0.0
        %v657 = vmax.f32 %v589, 0.0
        %v658 = vmax.f32 %v640, 0.0
        %v659 = vmax.f32 %v642, 0.0
        %v660 = vld [vmem:[%s4] sm:$0xf]
        %v661 = vld [vmem:[%s4 + $0x4] sm:$0xf]
        %v662 = vpack.c.bf16 %v648, %v644
        %v663 = vpack.c.bf16 %v649, %v645
        %v664 = vpack.c.bf16 %v650, %v646
        %v665 = vpack.c.bf16 %v651, %v647
        %v666 = vpack.c.bf16 %v656, %v652
        %v667 = vpack.c.bf16 %v657, %v653
        %v668 = vpack.c.bf16 %v658, %v654
        %v669 = vpack.c.bf16 %v659, %v655
        %v670 = vld [vmem:[%s5] sm:$0xff]
        %v671 = vld [vmem:[%s5 + $0x8] sm:$0xff]
        %673 = vset.pattern.permute.xlu0 0
        %674 = vperm.xlu0 %673, %v670
        %v675 = vpop.permute.xlu0 %674
        %678 = vset.pattern.permute.xlu0 0
        %679 = vperm.xlu0 %678, %v671
        %v680 = vpop.permute.xlu0 %679
        %v684 = vunpack.c.l.b16 %v660
        %v685 = vunpack.c.l.b16 %v661
        %v686 = vpack.c.b16 %v685, %v684
        %v688 = vsel %vm531, %v686, 0
        %690 = vmatprep.subr.bf16.mxu0 0
        %691 = vmatpush1.bf16.msra.mxu0 0
        %692 = vmatprep.subr.bf16.mxu0 0
        %693 = vmatpush1.bf16.msra.mxu0 0
        %694 = vmatprep.subr.bf16.mxu0 0
        %695 = vmatpush1.bf16.msra.mxu0 0
        %696 = vmatprep.subr.bf16.mxu0 0
        %697 = vmatpush1.bf16.msra.mxu0 0
        %698 = vmatprep.subr.bf16.mxu0 0
        %699 = vmatpush1.bf16.msra.mxu0 0
        %700 = vmatprep.subr.bf16.mxu0 0
        %701 = vmatpush1.bf16.msra.mxu0 0
        %702 = vmatprep.subr.bf16.mxu0 %v667
        %703 = vmatpush1.bf16.msra.mxu0 %v666
        %704 = vmatprep.subr.bf16.mxu0 %v663
        %705 = vmatpush1.bf16.msra.mxu0 %v662
        %706 = vmatprep.subr.bf16.mxu0 0
        %707 = vmatpush2.bf16.msra.mxu0 0
        %708 = vmatprep.subr.bf16.mxu0 0
        %709 = vmatpush2.bf16.msra.mxu0 0
        %710 = vmatprep.subr.bf16.mxu0 0
        %711 = vmatpush2.bf16.msra.mxu0 0
        %712 = vmatprep.subr.bf16.mxu0 0
        %713 = vmatpush2.bf16.msra.mxu0 0
        %714 = vmatprep.subr.bf16.mxu0 0
        %715 = vmatpush2.bf16.msra.mxu0 0
        %716 = vmatprep.subr.bf16.mxu0 0
        %717 = vmatpush2.bf16.msra.mxu0 0
        %718 = vmatprep.subr.bf16.mxu0 0
        %719 = vmatpush2.bf16.msra.mxu0 0
        %720 = vmatprep.subr.bf16.mxu0 0
        %721 = vmatpush2.bf16.msra.mxu0 0
        %722 = vmatprep.mubr.bf16.mxu0 0
        %723 = vmatmul.mubr.bf16.gmra.mxu0 %v688
        %v724 = vpop.f32.mrf.mxu0
        %v725 = vadd.f32 %v675, %v724
        %v726 = vpop.f32.mrf.mxu0
        %v727 = vadd.f32 %v675, %v726
        %v728 = vpop.f32.mrf.mxu0
        %v729 = vadd.f32 %v680, %v728
        %v730 = vpop.f32.mrf.mxu0
        %v731 = vadd.f32 %v680, %v730
        %732 = vdwg.mxu0
        %733 = vmatprep.subr.bf16.mxu0 0
        %734 = vmatpush1.bf16.msra.mxu0 0
        %735 = vmatprep.subr.bf16.mxu0 0
        %736 = vmatpush1.bf16.msra.mxu0 0
        %737 = vmatprep.subr.bf16.mxu0 0
        %738 = vmatpush1.bf16.msra.mxu0 0
        %739 = vmatprep.subr.bf16.mxu0 0
        %740 = vmatpush1.bf16.msra.mxu0 0
        %741 = vmatprep.subr.bf16.mxu0 0
        %742 = vmatpush1.bf16.msra.mxu0 0
        %743 = vmatprep.subr.bf16.mxu0 0
        %744 = vmatpush1.bf16.msra.mxu0 0
        %745 = vmatprep.subr.bf16.mxu0 %v669
        %746 = vmatpush1.bf16.msra.mxu0 %v668
        %747 = vmatprep.subr.bf16.mxu0 %v665
        %748 = vmatpush1.bf16.msra.mxu0 %v664
        %749 = vmatprep.subr.bf16.mxu0 0
        %750 = vmatpush2.bf16.msra.mxu0 0
        %751 = vmatprep.subr.bf16.mxu0 0
        %752 = vmatpush2.bf16.msra.mxu0 0
        %753 = vmatprep.subr.bf16.mxu0 0
        %754 = vmatpush2.bf16.msra.mxu0 0
        %755 = vmatprep.subr.bf16.mxu0 0
        %756 = vmatpush2.bf16.msra.mxu0 0
        %757 = vmatprep.subr.bf16.mxu0 0
        %758 = vmatpush2.bf16.msra.mxu0 0
        %759 = vmatprep.subr.bf16.mxu0 0
        %760 = vmatpush2.bf16.msra.mxu0 0
        %761 = vmatprep.subr.bf16.mxu0 0
        %762 = vmatpush2.bf16.msra.mxu0 0
        %763 = vmatprep.subr.bf16.mxu0 0
        %764 = vmatpush2.bf16.msra.mxu0 0
        %765 = vmatprep.mubr.bf16.mxu0 0
        %766 = vmatmul.mubr.bf16.gmra.mxu0 %v688
        %v767 = vpop.f32.mrf.mxu0
        %v768 = vadd.f32 %v675, %v767
        %v769 = vpop.f32.mrf.mxu0
        %v770 = vadd.f32 %v675, %v769
        %v771 = vpop.f32.mrf.mxu0
        %v772 = vadd.f32 %v680, %v771
        %v773 = vpop.f32.mrf.mxu0
        %v774 = vadd.f32 %v680, %v773
        %775 = vdwg.mxu0
        %v776 = vmax.f32 %v725, 0.0
        %v777 = vmax.f32 %v727, 0.0
        %v778 = vmax.f32 %v768, 0.0
        %v779 = vmax.f32 %v770, 0.0
        %v780 = vmax.f32 %v729, 0.0
        %v781 = vmax.f32 %v731, 0.0
        %v782 = vmax.f32 %v772, 0.0
        %v783 = vmax.f32 %v774, 0.0
        %v784 = vld [vmem:[%s6] sm:$0xff]
        %v785 = vld [vmem:[%s6 + $0x8] sm:$0xff]
        %787 = vset.pattern.permute.xlu0 0
        %788 = vperm.xlu0 %787, %v784
        %v789 = vpop.permute.xlu0 %788
        %792 = vset.pattern.permute.xlu0 0
        %793 = vperm.xlu0 %792, %v785
        %v794 = vpop.permute.xlu0 %793
        %v796 = vmul.f32 %v776, %v789
        %v797 = vmul.f32 %v777, %v789
        %v798 = vmul.f32 %v778, %v789
        %v799 = vmul.f32 %v779, %v789
        %v800 = vmul.f32 %v780, %v794
        %v801 = vmul.f32 %v781, %v794
        %v802 = vmul.f32 %v782, %v794
        %v803 = vmul.f32 %v783, %v794
        %v804 = vadd.f32 %v796, %v800
        %v805 = vrot.slane %v804, 4
        %v806 = vadd.f32 %v804, %v805
        %v807 = vrot.slane %v806, 2
        %v808 = vadd.f32 %v806, %v807
        %v809 = vrot.slane %v808, 1
        %v810 = vadd.f32 %v808, %v809
        %v811 = vadd.f32 %v797, %v801
        %v812 = vrot.slane %v811, 4
        %v813 = vadd.f32 %v811, %v812
        %v814 = vrot.slane %v813, 2
        %v815 = vadd.f32 %v813, %v814
        %v816 = vrot.slane %v815, 1
        %v817 = vadd.f32 %v815, %v816
        %v818 = vadd.f32 %v798, %v802
        %v819 = vrot.slane %v818, 4
        %v820 = vadd.f32 %v818, %v819
        %v821 = vrot.slane %v820, 2
        %v822 = vadd.f32 %v820, %v821
        %v823 = vrot.slane %v822, 1
        %v824 = vadd.f32 %v822, %v823
        %v825 = vadd.f32 %v799, %v803
        %v826 = vrot.slane %v825, 4
        %v827 = vadd.f32 %v825, %v826
        %v828 = vrot.slane %v827, 2
        %v829 = vadd.f32 %v827, %v828
        %v830 = vrot.slane %v829, 1
        %v831 = vadd.f32 %v829, %v830
        %v832 = vld [vmem:[#allocation2] sm:$0x1]
        %834 = vset.pattern.permute.xlu0 0
        %835 = vperm.xlu0 %834, %v832
        %v836 = vpop.permute.xlu0 %835
        %v838 = vlaneseq
        %v839 = vshrl.u32 %v838, 7
        %v840 = vsub.s32 0, %v839
        %v841 = vrot.slane %v836, %v840
        %v842 = vadd.f32 %v810, %v841
        %v843 = vadd.f32 %v817, %v841
        %v844 = vadd.f32 %v824, %v841
        %v845 = vadd.f32 %v831, %v841
        %v850 = vcombine.low %v842, %v843
        %v851 = vcombine.low %v844, %v845
        %v853 = vunpack.c.l.s4 1966171168
        %v854 = vunpack.c.0.s8 %v853
        %v855 = vlaneseq
        %v856 = vshrl.u32 %v855, 7
        %v857 = vsub.s32 %v854, %v856
        %v858 = vrot.slane %v850, %v857
        %v860 = vunpack.c.l.s4 1966171168
        %v861 = vunpack.c.0.s8 %v860
        %v862 = vlaneseq
        %v863 = vshrl.u32 %v862, 7
        %v864 = vsub.s32 %v861, %v863
        %v865 = vrot.slane %v851, %v864
        %v866 = vcombine.low %v858, %v865
        %v868 = vunpack.c.l.s4 1966171168
        %v869 = vunpack.c.0.s8 %v868
        %v870 = vlaneseq
        %v871 = vshrl.u32 %v870, 7
        %v872 = vsub.s32 %v869, %v871
        %v873 = vrot.slane %v866, %v872
        %v875 = vlaneseq
        %vm876 = vcmp.ge.s32.totalorder %v875, 0
        %vm877 = vcmp.lt.s32.totalorder %v875, 512
        %vm878 = vmand %vm876, %vm877
        %879 = vst.msk [vmem:[%s301] sm:$0xf] %vm878, %v873
        %s880 = sand.u32 %s205, 1
        %s881 = scalar_lea.sflag [#allocation4], %s880
        %s882 = sand.u32 %s205, 1
        %s883 = smul.addr %s882, 4
        %s884 = scalar_lea.vmem [#allocation3], %s883
        // Predicated region
        $region53: #{tpu_custom_call.1} parent=51 // pred_check
          %p885 = pneg %p215
        $region54: #{tpu_custom_call.1} parent=51 // pred_check_branch
          %887 = sbr.rel (%p885) target = $region56
        $region55: #{tpu_custom_call.1} parent=51 // pred_region
          %s888 = smul.u32 4, %s24
          %s890 = ssub.s32 64, 64
          %891 = vsyncadd %s881, %s890
          %s892 = smul.addr %s888, 16
          %s893 = scalar_lea.hbm %s8, %s892
          %s895 = sshll.u32 %s884, 4
          %s896 = int_to_ptr.vmem [resolvable:$true] %s895
          %898 = dma.vmem_to_hbm [thread:$0]  %s896, 64, %s893, %s881
        $region56: #{tpu_custom_call.1} parent=51 // pred_fallthru
          _
      $region52: #{tpu_custom_call.1} parent=5 // pred_fallthru
        _
      %p899 = scmp.le.s32.totalorder 2, %s19
      // Predicated region
      $region57: #{tpu_custom_call.1} parent=5 // pred_check
        %p900 = pneg %p899
      $region58: #{tpu_custom_call.1} parent=5 // pred_check_branch
        %902 = sbr.rel (%p900) target = $region60
      $region59: #{tpu_custom_call.1} parent=5 // pred_region
        %s903 = ssub.s32 %s19, 2
        // Predicated region
        $region61: #{tpu_custom_call.1} parent=59 // pred_check
          %p904 = pneg %p221
        $region62: #{tpu_custom_call.1} parent=59 // pred_check_branch
          %906 = sbr.rel (%p904) target = $region64
        $region63: #{tpu_custom_call.1} parent=59 // pred_region
          %s907 = sand.u32 %s206, 1
          %s908 = scalar_lea.sflag [#allocation4], %s907
          %s909 = sand.u32 %s206, 1
          %s910 = smul.addr %s909, 4
          %s911 = scalar_lea.vmem [#allocation3], %s910
          %912 = dma.done %s908, 64
        $region64: #{tpu_custom_call.1} parent=59 // pred_fallthru
          _
      $region60: #{tpu_custom_call.1} parent=5 // pred_fallthru
        _
    $region6: #{tpu_custom_call.1} parent=1 // loop_footer
      %s23 = sadd.s32 1, %s19
    $region7: #{tpu_custom_call.1} parent=1 // loop_footer_branch
      %18 = sbr.rel target = $region3
    $region8: #{tpu_custom_call.1} parent=1 // loop_exit
      _
    %913 = vsyncpa [#allocation4], 1
    %s914 = scalar_lea.sflag [#allocation4], 1
    %915 = vsyncpa %s914, 1

</llo_original>
